<compile_context>
chip_gen: v6e
topology: v6e:2x2x1
jax: 0.10.0
libtpu: 0.0.40
codegen_flags: <defaults>
</compile_context>

<pallas_src>
import jax
import jax.numpy as jnp
from jax.experimental import pallas as pl
from jax.experimental.pallas import tpu as pltpu

KSIZE = 7


# ------------------------------ fused kernel ------------------------------- #

def cbam_kernel(x_ref, w1_ref, b1_ref, w2_ref, b2_ref, m_ref, out_ref):
    """Fused ChannelGate + SpatialGate on one batch tile.

    x_ref:  (TB, C, H*W)        VMEM   lane-dense activation tile
    w1_ref: (C, Ch)             VMEM   Linear(C, Ch) weight (transposed)
    b1_ref: (1, Ch)             VMEM
    w2_ref: (Ch, C)             VMEM   Linear(Ch, C) weight (transposed)
    b2_ref: (1, C)              VMEM
    m_ref:  (2, H*W, H*W)       VMEM   banded conv matrices [max, mean]
    out_ref:(TB, C, H*W)        VMEM
    """
    x = x_ref[...].astype(jnp.float32)                     # (TB, C, HW)
    tb = x.shape[0]

    # ---------------- channel gate ---------------- #
    avg = jnp.mean(x, axis=-1)                             # (TB, C)  avg_pool2d
    mx = jnp.max(x, axis=-1)                               # (TB, C)  max_pool2d
    pooled = jnp.concatenate([avg, mx], axis=0)            # (2*TB, C) -> one MXU pass

    h = jnp.dot(pooled, w1_ref[...],
                preferred_element_type=jnp.float32) + b1_ref[...]
    h = jnp.maximum(h, 0.0)                                # ReLU
    att = jnp.dot(h, w2_ref[...],
                  preferred_element_type=jnp.float32) + b2_ref[...]   # (2*TB, C)

    ch_att = att[:tb] + att[tb:]                           # sum over pool types
    ch_scale = jax.nn.sigmoid(ch_att)                      # (TB, C)
    x_cg = x * ch_scale[:, :, None]                        # (TB, C, HW)

    # ---------------- spatial gate ---------------- #
    sp_max = jnp.max(x_cg, axis=1)                         # (TB, HW) channel max
    sp_mean = jnp.mean(x_cg, axis=1)                       # (TB, HW) channel mean

    # 7x7 conv (in=2, out=1, no bias) as two MXU matmuls with banded matrices.
    attn = (jnp.dot(sp_max, m_ref[0], preferred_element_type=jnp.float32)
            + jnp.dot(sp_mean, m_ref[1], preferred_element_type=jnp.float32))

    sp_scale = jax.nn.sigmoid(attn)                        # (TB, HW)
    out_ref[...] = (x_cg * sp_scale[:, None, :]).astype(out_ref.dtype)


# ------------------------------ wrapper ------------------------------------ #

def _build_conv_mats(wconv, H, W, K=KSIZE):
    """Banded matrices M[c] of shape (H*W, H*W) s.t. conv(comp)[b] = comp[b,c] @ M[c]."""
    P = (K - 1) // 2
    wc = wconv.reshape(2, K, K).astype(jnp.float32)        # [c, ky, kx]
    ys = jnp.arange(H)
    xs = jnp.arange(W)
    dy = ys[:, None] - ys[None, :] + P                     # (H, H): yin - yout + P
    dx = xs[:, None] - xs[None, :] + P                     # (W, W): xin - xout + P
    vy = (dy >= 0) & (dy < K)
    vx = (dx >= 0) & (dx < K)
    dyc = jnp.clip(dy, 0, K - 1)
    dxc = jnp.clip(dx, 0, K - 1)
    # taps[c, yin, yout, xin, xout] = wc[c, dy, dx]
    taps = wc[:, dyc][:, :, :, dxc]                        # (2, H, H, W, W)
    valid = vy[None, :, :, None, None] & vx[None, None, None, :, :]
    taps = jnp.where(valid, taps, 0.0)
    # -> [c, (yin, xin), (yout, xout)]
    return jnp.transpose(taps, (0, 1, 3, 2, 4)).reshape(2, H * W, H * W)


def _choose_block_b(B, C, HW, itemsize):
    # Conservative tile budget for the double-buffered x/out tiles (fits the
    # 32 MiB default scoped VMEM on v7x/v6e and 16 MiB on v5e with headroom).
    budget = 8 * 1024 * 1024
    per_b = C * HW * itemsize
    bb = max(1, min(B, budget // max(1, 4 * per_b)))
    if B >= 2:
        # keep >= 2 grid steps so the "parallel" batch axis can shard across
        # the two TensorCores on v7x (megacore).
        bb = max(1, min(bb, B // 2))
    while B % bb:
        bb -= 1
    return bb


def cbam_forward(x, params):
    w1, b1, w2, b2, wconv = params
    B, C, H, W = x.shape
    HW = H * W

    mats = _build_conv_mats(wconv, H, W)                   # (2, HW, HW)
    block_b = _choose_block_b(B, C, HW, x.dtype.itemsize)
    grid = (B // block_b,)

    x_flat = x.reshape(B, C, HW)

    out = pl.pallas_call(
        cbam_kernel,
        out_shape=jax.ShapeDtypeStruct((B, C, HW), x.dtype),
        grid_spec=pltpu.PrefetchScalarGridSpec(
            num_scalar_prefetch=0,
            grid=grid,
            in_specs=[
                pl.BlockSpec((block_b, C, HW), lambda b: (b, 0, 0)),
                pl.BlockSpec(w1.shape, lambda b: (0, 0)),
                pl.BlockSpec(b1.shape, lambda b: (0, 0)),
                pl.BlockSpec(w2.shape, lambda b: (0, 0)),
                pl.BlockSpec(b2.shape, lambda b: (0, 0)),
                pl.BlockSpec(mats.shape, lambda b: (0, 0, 0)),
            ],
            out_specs=pl.BlockSpec((block_b, C, HW), lambda b: (b, 0, 0)),
        ),
        compiler_params=pltpu.CompilerParams(
            dimension_semantics=("parallel",),
            vmem_limit_bytes=32 * 1024 * 1024,
        ),
        input_output_aliases={0: 0},
    )(x_flat, w1, b1, w2, b2, mats)

    return out.reshape(B, C, H, W)


# ------------------------ params / reference -------------------------------- #

def init_params(key, C, reduction_ratio=16):
    hidden = C // reduction_ratio
    k1, k2, k3, k4, k5 = jax.random.split(key, 5)
    lim1 = 1.0 / jnp.sqrt(jnp.float32(C))
    w1 = jax.random.uniform(k1, (C, hidden), jnp.float32, -lim1, lim1)
    b1 = jax.random.uniform(k2, (1, hidden), jnp.float32, -lim1, lim1)
    lim2 = 1.0 / jnp.sqrt(jnp.float32(hidden))
    w2 = jax.random.uniform(k3, (hidden, C), jnp.float32, -lim2, lim2)
    b2 = jax.random.uniform(k4, (1, C), jnp.float32, -lim2, lim2)
    limc = 1.0 / jnp.sqrt(jnp.float32(2 * KSIZE * KSIZE))
    wconv = jax.random.uniform(k5, (2 * KSIZE * KSIZE,), jnp.float32, -limc, limc)
    return (w1, b1, w2, b2, wconv)


def cbam_reference(x, params):
    """Pure-JAX reference mirroring the PyTorch forward."""
    w1, b1, w2, b2, wconv = params
    avg = jnp.mean(x, axis=(2, 3))
    mx = jnp.max(x, axis=(2, 3))

    def mlp(v):
        h = jnp.maximum(v @ w1 + b1, 0.0)
        return h @ w2 + b2

    scale = jax.nn.sigmoid(mlp(avg) + mlp(mx))
    x_cg = x * scale[:, :, None, None]

    comp = jnp.stack([jnp.max(x_cg, axis=1), jnp.mean(x_cg, axis=1)], axis=1)
    wc = wconv.reshape(1, 2, KSIZE, KSIZE)
    pad = (KSIZE - 1) // 2
    attn = jax.lax.conv_general_dilated(
        comp, wc, window_strides=(1, 1), padding=[(pad, pad), (pad, pad)],
        dimension_numbers=("NCHW", "OIHW", "NCHW"))
    return x_cg * jax.nn.sigmoid(attn)


# ------------------------------- main --------------------------------------- #

if __name__ == "__main__":
    key = jax.random.PRNGKey(0)
    kx, kp = jax.random.split(key)

    B, C, H, W = 2, 32, 16, 16      # gate_channels=32, reduction_ratio=16 -> hidden=2
    x = jax.random.normal(kx, (B, C, H, W), jnp.float32)
    params = init_params(kp, C, reduction_ratio=16)

    y = jax.jit(cbam_forward)(x, params)
    y = jax.block_until_ready(y)

    y_ref = cbam_reference(x, params)
    assert y.shape == x.shape and y.dtype == x.dtype
    # Slightly loose atol: MXU accumulation order differs from the XLA
    # reference conv / matmuls; outputs are O(1).
    assert jnp.allclose(y, y_ref, rtol=1e-4, atol=1e-4), "mismatch vs reference"

    print("KERNEL_OK")
</pallas_src>

<mosaic_0001>
module attributes {stable_mosaic.version = 11 : i64} {
  func.func @cbam_kernel(%arg0: i32, %arg1: memref<1x32x256xf32, #tpu.memory_space<vmem>>, %arg2: memref<32x2xf32, #tpu.memory_space<vmem>>, %arg3: memref<1x2xf32, #tpu.memory_space<vmem>>, %arg4: memref<2x32xf32, #tpu.memory_space<vmem>>, %arg5: memref<1x32xf32, #tpu.memory_space<vmem>>, %arg6: memref<2x256x256xf32, #tpu.memory_space<vmem>>, %arg7: memref<1x32x256xf32, #tpu.memory_space<vmem>>) attributes {dimension_semantics = [#tpu.dimension_semantics<parallel>], iteration_bounds = array<i64: 2>, scalar_prefetch = 0 : i64, scratch_operands = 0 : i64, tpu.core_type = #tpu.core_type<tc>, window_params = [{transform_indices = @transform_0, window_bounds = array<i64: 1, 32, 256>}, {pipeline_mode = #tpu.pipeline_mode<synchronous>, transform_indices = @transform_1, window_bounds = array<i64: 32, 2>}, {pipeline_mode = #tpu.pipeline_mode<synchronous>, transform_indices = @transform_2, window_bounds = array<i64: 1, 2>}, {pipeline_mode = #tpu.pipeline_mode<synchronous>, transform_indices = @transform_3, window_bounds = array<i64: 2, 32>}, {pipeline_mode = #tpu.pipeline_mode<synchronous>, transform_indices = @transform_4, window_bounds = array<i64: 1, 32>}, {pipeline_mode = #tpu.pipeline_mode<synchronous>, transform_indices = @transform_5, window_bounds = array<i64: 2, 256, 256>}, {transform_indices = @transform_6, window_bounds = array<i64: 1, 32, 256>}]} {
    %c0 = arith.constant 0 : index
    %c0_0 = arith.constant 0 : index
    %c0_1 = arith.constant 0 : index
    %0 = vector.load %arg1[%c0, %c0_0, %c0_1] : memref<1x32x256xf32, #tpu.memory_space<vmem>>, vector<1x32x256xf32>
    %cst = arith.constant dense<0.000000e+00> : vector<1x32xf32>
    %1 = vector.multi_reduction <add>, %0, %cst [2] : vector<1x32x256xf32> to vector<1x32xf32>
    %cst_2 = arith.constant 2.560000e+02 : f32
    %2 = vector.broadcast %cst_2 : f32 to vector<1x32xf32>
    %3 = arith.divf %1, %2 : vector<1x32xf32>
    %cst_3 = arith.constant dense<0xFF800000> : vector<1x32xf32>
    %4 = vector.multi_reduction <maximumf>, %0, %cst_3 [2] : vector<1x32x256xf32> to vector<1x32xf32>
    %5 = tpu.concatenate %3, %4 in 0 : vector<1x32xf32>, vector<1x32xf32> -> vector<2x32xf32>
    %c0_4 = arith.constant 0 : index
    %c0_5 = arith.constant 0 : index
    %6 = vector.load %arg2[%c0_4, %c0_5] : memref<32x2xf32, #tpu.memory_space<vmem>>, vector<32x2xf32>
    %cst_6 = arith.constant dense<0.000000e+00> : vector<2x2xf32>
    %7 = tpu.matmul %5, %6, %cst_6 {dimension_numbers = #tpu.dot_dimension_numbers<[1], [0], [0], [1], [0, 0, 1, 1], [], []>} : vector<2x32xf32>, vector<32x2xf32>, vector<2x2xf32> -> vector<2x2xf32>
    %c0_7 = arith.constant 0 : index
    %c0_8 = arith.constant 0 : index
    %8 = vector.load %arg3[%c0_7, %c0_8] : memref<1x2xf32, #tpu.memory_space<vmem>>, vector<1x2xf32>
    %9 = vector.broadcast %8 : vector<1x2xf32> to vector<2x2xf32>
    %10 = arith.addf %7, %9 : vector<2x2xf32>
    %cst_9 = arith.constant 0.000000e+00 : f32
    %11 = vector.broadcast %cst_9 : f32 to vector<2x2xf32>
    %12 = arith.maximumf %10, %11 : vector<2x2xf32>
    %c0_10 = arith.constant 0 : index
    %c0_11 = arith.constant 0 : index
    %13 = vector.load %arg4[%c0_10, %c0_11] : memref<2x32xf32, #tpu.memory_space<vmem>>, vector<2x32xf32>
    %cst_12 = arith.constant dense<0.000000e+00> : vector<2x32xf32>
    %14 = tpu.matmul %12, %13, %cst_12 {dimension_numbers = #tpu.dot_dimension_numbers<[1], [0], [0], [1], [0, 0, 1, 1], [], []>} : vector<2x2xf32>, vector<2x32xf32>, vector<2x32xf32> -> vector<2x32xf32>
    %c0_13 = arith.constant 0 : index
    %c0_14 = arith.constant 0 : index
    %15 = vector.load %arg5[%c0_13, %c0_14] : memref<1x32xf32, #tpu.memory_space<vmem>>, vector<1x32xf32>
    %16 = vector.broadcast %15 : vector<1x32xf32> to vector<2x32xf32>
    %17 = arith.addf %14, %16 : vector<2x32xf32>
    %18 = vector.extract_strided_slice %17 {offsets = [0, 0], sizes = [1, 32], strides = [1, 1]} : vector<2x32xf32> to vector<1x32xf32>
    %19 = vector.extract_strided_slice %17 {offsets = [1, 0], sizes = [1, 32], strides = [1, 1]} : vector<2x32xf32> to vector<1x32xf32>
    %20 = arith.addf %18, %19 : vector<1x32xf32>
    %21 = arith.negf %20 : vector<1x32xf32>
    %22 = math.exp %21 : vector<1x32xf32>
    %cst_15 = arith.constant 1.000000e+00 : f32
    %23 = vector.broadcast %cst_15 : f32 to vector<1x32xf32>
    %24 = arith.addf %23, %22 : vector<1x32xf32>
    %25 = arith.divf %23, %24 : vector<1x32xf32>
    %26 = vector.shape_cast %25 : vector<1x32xf32> to vector<1x32x1xf32>
    %27 = vector.broadcast %26 : vector<1x32x1xf32> to vector<1x32x256xf32>
    %28 = arith.mulf %0, %27 : vector<1x32x256xf32>
    %cst_16 = arith.constant dense<0xFF800000> : vector<1x256xf32>
    %29 = vector.multi_reduction <maximumf>, %28, %cst_16 [1] : vector<1x32x256xf32> to vector<1x256xf32>
    %cst_17 = arith.constant dense<0.000000e+00> : vector<1x256xf32>
    %30 = vector.multi_reduction <add>, %28, %cst_17 [1] : vector<1x32x256xf32> to vector<1x256xf32>
    %cst_18 = arith.constant 3.200000e+01 : f32
    %31 = vector.broadcast %cst_18 : f32 to vector<1x256xf32>
    %32 = arith.divf %30, %31 : vector<1x256xf32>
    %c0_19 = arith.constant 0 : index
    %c0_20 = arith.constant 0 : index
    %c0_21 = arith.constant 0 : index
    %33 = vector.load %arg6[%c0_19, %c0_20, %c0_21] : memref<2x256x256xf32, #tpu.memory_space<vmem>>, vector<1x256x256xf32>
    %34 = vector.shape_cast %33 : vector<1x256x256xf32> to vector<256x256xf32>
    %cst_22 = arith.constant dense<0.000000e+00> : vector<1x256xf32>
    %35 = tpu.matmul %29, %34, %cst_22 {dimension_numbers = #tpu.dot_dimension_numbers<[1], [0], [0], [1], [0, 0, 1, 1], [], []>} : vector<1x256xf32>, vector<256x256xf32>, vector<1x256xf32> -> vector<1x256xf32>
    %c1 = arith.constant 1 : index
    %c0_23 = arith.constant 0 : index
    %c0_24 = arith.constant 0 : index
    %36 = vector.load %arg6[%c1, %c0_23, %c0_24] : memref<2x256x256xf32, #tpu.memory_space<vmem>>, vector<1x256x256xf32>
    %37 = vector.shape_cast %36 : vector<1x256x256xf32> to vector<256x256xf32>
    %cst_25 = arith.constant dense<0.000000e+00> : vector<1x256xf32>
    %38 = tpu.matmul %32, %37, %cst_25 {dimension_numbers = #tpu.dot_dimension_numbers<[1], [0], [0], [1], [0, 0, 1, 1], [], []>} : vector<1x256xf32>, vector<256x256xf32>, vector<1x256xf32> -> vector<1x256xf32>
    %39 = arith.addf %35, %38 : vector<1x256xf32>
    %40 = arith.negf %39 : vector<1x256xf32>
    %41 = math.exp %40 : vector<1x256xf32>
    %cst_26 = arith.constant 1.000000e+00 : f32
    %42 = vector.broadcast %cst_26 : f32 to vector<1x256xf32>
    %43 = arith.addf %42, %41 : vector<1x256xf32>
    %44 = arith.divf %42, %43 : vector<1x256xf32>
    %45 = vector.shape_cast %44 : vector<1x256xf32> to vector<1x1x256xf32>
    %46 = vector.broadcast %45 : vector<1x1x256xf32> to vector<1x32x256xf32>
    %47 = arith.mulf %28, %46 : vector<1x32x256xf32>
    %c0_27 = arith.constant 0 : index
    %c0_28 = arith.constant 0 : index
    %c0_29 = arith.constant 0 : index
    %48 = vector.load %arg7[%c0_27, %c0_28, %c0_29] : memref<1x32x256xf32, #tpu.memory_space<vmem>>, vector<1x32x256xf32>
    tpu.vector_store %arg7[%c0_27, %c0_28, %c0_29], %47 {strides = array<i32>} : memref<1x32x256xf32, #tpu.memory_space<vmem>>, vector<1x32x256xf32>,
    return
  }
  func.func @transform_0(%arg0: i32) -> (i32, i32, i32) {
    %c0_i32 = arith.constant 0 : i32
    %c0_i32_0 = arith.constant 0 : i32
    %c0_i32_1 = arith.constant 0 : i32
    return %arg0, %c0_i32, %c0_i32_0 : i32, i32, i32
  }
  func.func @transform_1(%arg0: i32) -> (i32, i32) {
    %c0_i32 = arith.constant 0 : i32
    %c0_i32_0 = arith.constant 0 : i32
    %c0_i32_1 = arith.constant 0 : i32
    return %c0_i32, %c0_i32_0 : i32, i32
  }
  func.func @transform_2(%arg0: i32) -> (i32, i32) {
    %c0_i32 = arith.constant 0 : i32
    %c0_i32_0 = arith.constant 0 : i32
    %c0_i32_1 = arith.constant 0 : i32
    return %c0_i32, %c0_i32_0 : i32, i32
  }
  func.func @transform_3(%arg0: i32) -> (i32, i32) {
    %c0_i32 = arith.constant 0 : i32
    %c0_i32_0 = arith.constant 0 : i32
    %c0_i32_1 = arith.constant 0 : i32
    return %c0_i32, %c0_i32_0 : i32, i32
  }
  func.func @transform_4(%arg0: i32) -> (i32, i32) {
    %c0_i32 = arith.constant 0 : i32
    %c0_i32_0 = arith.constant 0 : i32
    %c0_i32_1 = arith.constant 0 : i32
    return %c0_i32, %c0_i32_0 : i32, i32
  }
  func.func @transform_5(%arg0: i32) -> (i32, i32, i32) {
    %c0_i32 = arith.constant 0 : i32
    %c0_i32_0 = arith.constant 0 : i32
    %c0_i32_1 = arith.constant 0 : i32
    %c0_i32_2 = arith.constant 0 : i32
    return %c0_i32, %c0_i32_0, %c0_i32_1 : i32, i32, i32
  }
  func.func @transform_6(%arg0: i32) -> (i32, i32, i32) {
    %c0_i32 = arith.constant 0 : i32
    %c0_i32_0 = arith.constant 0 : i32
    %c0_i32_1 = arith.constant 0 : i32
    return %arg0, %c0_i32, %c0_i32_0 : i32, i32, i32
  }
}

</mosaic_0001>

<llo_original>
// kernel: cbam_forward.1
$region0: #{cbam_forward.1}
  #allocation0 [shape = 'u32[]', space=smem, size = 0x4, offset = 0x4, fixed_abs, tag = 'smem constant byte address 0x4 - core index']
  #allocation1 [shape = 'u32[144,128]{1,0:T(1,128)}', space=vmem, size = 0x12000, scoped, tag = 'internal scratch']
  %s0 = inlined_call_operand.vmem [shape: f32[2,32,256], index: 0, kind: input, shape index: {}, may-alias: {0,6}]
  %s1 = inlined_call_operand.vmem [shape: f32[32,2], index: 1, kind: input, shape index: {}]
  %s2 = inlined_call_operand.vmem [shape: f32[1,2], index: 2, kind: input, shape index: {}]
  %s3 = inlined_call_operand.vmem [shape: f32[2,32], index: 3, kind: input, shape index: {}]
  %s4 = inlined_call_operand.vmem [shape: f32[1,32], index: 4, kind: input, shape index: {}]
  %s5 = inlined_call_operand.vmem [shape: f32[2,256,256], index: 5, kind: input, shape index: {}]
  %s6 = inlined_call_operand.vmem [shape: f32[2,32,256], index: 6, kind: output, shape index: {}, may-alias: {0,6}]
  %s7 = sld [smem:[#allocation0]]
  $region57: #{cbam_forward.1} parent=0
    _
  %s9 = ssub.s32 1, %s7
  %s10 = scalar_select 0, %s9, %s7
  loop: start=0, step=1, limit=4
  $region2: #{cbam_forward.1} parent=0 // loop_pre_header
    _
  $region3: #{cbam_forward.1} parent=0 // loop_header
    %s12 = sphi 0, %s16
    %p13 = scmp.ge.s32.totalorder %s12, 4
    %s22 = sphi 0, %s24
    %s25 = sphi 0, %s22
    %s26 = sphi 0, %s25
    %s42 = sphi 0, %s26
    %s46 = sphi 0, %s46
    %s48 = sphi 0, %s46
    %s49 = sphi 0, %s48
    %s63 = sphi 0, %s49
    %s67 = sphi 0, %s67
    %s69 = sphi 0, %s67
    %s70 = sphi 0, %s69
    %s84 = sphi 0, %s70
    %s88 = sphi 0, %s88
    %s90 = sphi 0, %s88
    %s91 = sphi 0, %s90
    %s105 = sphi 0, %s91
    %s109 = sphi 0, %s109
    %s111 = sphi 0, %s109
    %s112 = sphi 0, %s111
    %s126 = sphi 0, %s112
    %s130 = sphi 0, %s130
    %s132 = sphi 0, %s130
    %s133 = sphi 0, %s132
    %s147 = sphi 0, %s133
    %s153 = sphi 0, %s155
    %s156 = sphi 0, %s153
    %s157 = sphi 0, %s156
    %s173 = sphi 0, %s157
  $region4: #{cbam_forward.1} parent=0 // loop_header_branch
    %15 = sbr.rel (%p13) target = $region8
  $region5: #{cbam_forward.1} parent=0 // loop_body
    %s17 = ssub.s32 %s12, 1
    %s18 = ssub.s32 %s12, 2
    %s19 = sadd.s32 %s12, 1
    %s20 = ssub.s32 %s12, %s19
    %p21 = scmp.eq.s32.totalorder %s20, 0
    %s23 = sadd.s32 %s22, 1
    %s24 = scalar_select %p21, %s22, %s23
    %p27 = pneg %p21
    %p28 = scmp.eq.s32.totalorder %s12, 1
    %p29 = por %p27, %p28
    %p30 = scmp.ne.s32.totalorder %s22, %s25
    %p31 = scmp.eq.s32.totalorder %s12, 0
    %p32 = por %p30, %p31
    %p33 = scmp.ne.s32.totalorder %s22, %s25
    %p34 = scmp.eq.s32.totalorder %s17, 1
    %p35 = por %p33, %p34
    %p36 = scmp.ne.s32.totalorder %s25, %s26
    %p37 = scmp.eq.s32.totalorder %s17, 0
    %p38 = por %p36, %p37
    %p39 = scmp.ne.s32.totalorder %s25, %s26
    %p40 = scmp.eq.s32.totalorder %s18, 1
    %p41 = por %p39, %p40
    %p43 = scmp.ne.s32.totalorder %s26, %s42
    %p44 = scmp.eq.s32.totalorder %s18, 0
    %p45 = por %p43, %p44
    %s47 = sadd.s32 %s46, 1
    %p50 = scmp.eq.s32.totalorder %s12, 1
    %p51 = scmp.ne.s32.totalorder %s46, %s48
    %p52 = scmp.eq.s32.totalorder %s12, 0
    %p53 = por %p51, %p52
    %p54 = scmp.ne.s32.totalorder %s46, %s48
    %p55 = scmp.eq.s32.totalorder %s17, 1
    %p56 = por %p54, %p55
    %p57 = scmp.ne.s32.totalorder %s48, %s49
    %p58 = scmp.eq.s32.totalorder %s17, 0
    %p59 = por %p57, %p58
    %p60 = scmp.ne.s32.totalorder %s48, %s49
    %p61 = scmp.eq.s32.totalorder %s18, 1
    %p62 = por %p60, %p61
    %p64 = scmp.ne.s32.totalorder %s49, %s63
    %p65 = scmp.eq.s32.totalorder %s18, 0
    %p66 = por %p64, %p65
    %s68 = sadd.s32 %s67, 1
    %p71 = scmp.eq.s32.totalorder %s12, 1
    %p72 = scmp.ne.s32.totalorder %s67, %s69
    %p73 = scmp.eq.s32.totalorder %s12, 0
    %p74 = por %p72, %p73
    %p75 = scmp.ne.s32.totalorder %s67, %s69
    %p76 = scmp.eq.s32.totalorder %s17, 1
    %p77 = por %p75, %p76
    %p78 = scmp.ne.s32.totalorder %s69, %s70
    %p79 = scmp.eq.s32.totalorder %s17, 0
    %p80 = por %p78, %p79
    %p81 = scmp.ne.s32.totalorder %s69, %s70
    %p82 = scmp.eq.s32.totalorder %s18, 1
    %p83 = por %p81, %p82
    %p85 = scmp.ne.s32.totalorder %s70, %s84
    %p86 = scmp.eq.s32.totalorder %s18, 0
    %p87 = por %p85, %p86
    %s89 = sadd.s32 %s88, 1
    %p92 = scmp.eq.s32.totalorder %s12, 1
    %p93 = scmp.ne.s32.totalorder %s88, %s90
    %p94 = scmp.eq.s32.totalorder %s12, 0
    %p95 = por %p93, %p94
    %p96 = scmp.ne.s32.totalorder %s88, %s90
    %p97 = scmp.eq.s32.totalorder %s17, 1
    %p98 = por %p96, %p97
    %p99 = scmp.ne.s32.totalorder %s90, %s91
    %p100 = scmp.eq.s32.totalorder %s17, 0
    %p101 = por %p99, %p100
    %p102 = scmp.ne.s32.totalorder %s90, %s91
    %p103 = scmp.eq.s32.totalorder %s18, 1
    %p104 = por %p102, %p103
    %p106 = scmp.ne.s32.totalorder %s91, %s105
    %p107 = scmp.eq.s32.totalorder %s18, 0
    %p108 = por %p106, %p107
    %s110 = sadd.s32 %s109, 1
    %p113 = scmp.eq.s32.totalorder %s12, 1
    %p114 = scmp.ne.s32.totalorder %s109, %s111
    %p115 = scmp.eq.s32.totalorder %s12, 0
    %p116 = por %p114, %p115
    %p117 = scmp.ne.s32.totalorder %s109, %s111
    %p118 = scmp.eq.s32.totalorder %s17, 1
    %p119 = por %p117, %p118
    %p120 = scmp.ne.s32.totalorder %s111, %s112
    %p121 = scmp.eq.s32.totalorder %s17, 0
    %p122 = por %p120, %p121
    %p123 = scmp.ne.s32.totalorder %s111, %s112
    %p124 = scmp.eq.s32.totalorder %s18, 1
    %p125 = por %p123, %p124
    %p127 = scmp.ne.s32.totalorder %s112, %s126
    %p128 = scmp.eq.s32.totalorder %s18, 0
    %p129 = por %p127, %p128
    %s131 = sadd.s32 %s130, 1
    %p134 = scmp.eq.s32.totalorder %s12, 1
    %p135 = scmp.ne.s32.totalorder %s130, %s132
    %p136 = scmp.eq.s32.totalorder %s12, 0
    %p137 = por %p135, %p136
    %p138 = scmp.ne.s32.totalorder %s130, %s132
    %p139 = scmp.eq.s32.totalorder %s17, 1
    %p140 = por %p138, %p139
    %p141 = scmp.ne.s32.totalorder %s132, %s133
    %p142 = scmp.eq.s32.totalorder %s17, 0
    %p143 = por %p141, %p142
    %p144 = scmp.ne.s32.totalorder %s132, %s133
    %p145 = scmp.eq.s32.totalorder %s18, 1
    %p146 = por %p144, %p145
    %p148 = scmp.ne.s32.totalorder %s133, %s147
    %p149 = scmp.eq.s32.totalorder %s18, 0
    %p150 = por %p148, %p149
    %s151 = ssub.s32 %s12, %s19
    %p152 = scmp.eq.s32.totalorder %s151, 0
    %s154 = sadd.s32 %s153, 1
    %s155 = scalar_select %p152, %s153, %s154
    %p158 = pneg %p152
    %p159 = scmp.eq.s32.totalorder %s12, 1
    %p160 = por %p158, %p159
    %p161 = scmp.ne.s32.totalorder %s153, %s156
    %p162 = scmp.eq.s32.totalorder %s12, 0
    %p163 = por %p161, %p162
    %p164 = scmp.ne.s32.totalorder %s153, %s156
    %p165 = scmp.eq.s32.totalorder %s17, 1
    %p166 = por %p164, %p165
    %p167 = scmp.ne.s32.totalorder %s156, %s157
    %p168 = scmp.eq.s32.totalorder %s17, 0
    %p169 = por %p167, %p168
    %p170 = scmp.ne.s32.totalorder %s156, %s157
    %p171 = scmp.eq.s32.totalorder %s18, 1
    %p172 = por %p170, %p171
    %p174 = scmp.ne.s32.totalorder %s157, %s173
    %p175 = scmp.eq.s32.totalorder %s18, 0
    %p176 = por %p174, %p175
    %p177 = scmp.le.s32.totalorder 1, %s12
    %p178 = scmp.lt.s32.totalorder %s12, 3
    %p179 = pnand %p177, %p178
    %p180 = pneg %p179
    // Predicated region
    $region9: #{cbam_forward.1} parent=5 // pred_check
      _
    $region10: #{cbam_forward.1} parent=5 // pred_check_branch
      %182 = sbr.rel (%p179) target = $region12
    $region11: #{cbam_forward.1} parent=5 // pred_region
      %s183 = ssub.s32 %s12, 1
      // Predicated region
      $region13: #{cbam_forward.1} parent=11 // pred_check
        %p184 = pneg %p59
      $region14: #{cbam_forward.1} parent=11 // pred_check_branch
        %186 = sbr.rel (%p184) target = $region16
      $region15: #{cbam_forward.1} parent=11 // pred_region
        _
      $region16: #{cbam_forward.1} parent=11 // pred_fallthru
        _
      // Predicated region
      $region17: #{cbam_forward.1} parent=11 // pred_check
        %p187 = pneg %p80
      $region18: #{cbam_forward.1} parent=11 // pred_check_branch
        %189 = sbr.rel (%p187) target = $region20
      $region19: #{cbam_forward.1} parent=11 // pred_region
        _
      $region20: #{cbam_forward.1} parent=11 // pred_fallthru
        _
      // Predicated region
      $region21: #{cbam_forward.1} parent=11 // pred_check
        %p190 = pneg %p101
      $region22: #{cbam_forward.1} parent=11 // pred_check_branch
        %192 = sbr.rel (%p190) target = $region24
      $region23: #{cbam_forward.1} parent=11 // pred_region
        _
      $region24: #{cbam_forward.1} parent=11 // pred_fallthru
        _
      // Predicated region
      $region25: #{cbam_forward.1} parent=11 // pred_check
        %p193 = pneg %p122
      $region26: #{cbam_forward.1} parent=11 // pred_check_branch
        %195 = sbr.rel (%p193) target = $region28
      $region27: #{cbam_forward.1} parent=11 // pred_region
        _
      $region28: #{cbam_forward.1} parent=11 // pred_fallthru
        _
      // Predicated region
      $region29: #{cbam_forward.1} parent=11 // pred_check
        %p196 = pneg %p143
      $region30: #{cbam_forward.1} parent=11 // pred_check_branch
        %198 = sbr.rel (%p196) target = $region32
      $region31: #{cbam_forward.1} parent=11 // pred_region
        _
      $region32: #{cbam_forward.1} parent=11 // pred_fallthru
        _
    $region12: #{cbam_forward.1} parent=5 // pred_fallthru
      _
    %p199 = scmp.lt.s32.totalorder %s12, 2
    // Predicated region
    $region33: #{cbam_forward.1} parent=5 // pred_check
      %p200 = pneg %p199
    $region34: #{cbam_forward.1} parent=5 // pred_check_branch
      %202 = sbr.rel (%p200) target = $region36
    $region35: #{cbam_forward.1} parent=5 // pred_region
      // Predicated region
      $region37: #{cbam_forward.1} parent=35 // pred_check
        %p203 = pneg %p32
      $region38: #{cbam_forward.1} parent=35 // pred_check_branch
        %205 = sbr.rel (%p203) target = $region40
      $region39: #{cbam_forward.1} parent=35 // pred_region
        %p206 = scmp.lt.s32.totalorder %s12, 1
        %s207 = scalar_select %p206, %s12, 1
        %s208 = smul.addr %s207, 8
        %s209 = smul.addr %s208, 8
        %s210 = scalar_lea.vmem %s0, %s209
      $region40: #{cbam_forward.1} parent=35 // pred_fallthru
        _
    $region36: #{cbam_forward.1} parent=5 // pred_fallthru
      _
    %p211 = scmp.le.s32.totalorder 1, %s12
    %p212 = scmp.lt.s32.totalorder %s12, 3
    %p213 = pnand %p211, %p212
    %p214 = pneg %p213
    // Predicated region
    $region41: #{cbam_forward.1} parent=5 // pred_check
      _
    $region42: #{cbam_forward.1} parent=5 // pred_check_branch
      %216 = sbr.rel (%p213) target = $region44
    $region43: #{cbam_forward.1} parent=5 // pred_region
      %s217 = ssub.s32 %s12, 1
      %p218 = scmp.lt.s32.totalorder %s17, 1
      %s219 = scalar_select %p218, %s17, 1
      %s220 = smul.addr %s219, 8
      %s221 = smul.addr %s220, 8
      %s222 = scalar_lea.vmem %s0, %s221
      %p223 = pneg %p38
      %p224 = pneg %p35
      %p225 = pneg %p59
      %p226 = pneg %p56
      %p227 = pneg %p80
      %p228 = pneg %p77
      %p229 = pneg %p101
      %p230 = pneg %p98
      %p231 = pneg %p122
      %p232 = pneg %p119
      %p233 = pneg %p143
      %p234 = pneg %p140
      %p235 = pneg %p169
      %p236 = pneg %p166
      %p237 = scmp.lt.s32.totalorder %s17, 1
      %s238 = scalar_select %p237, %s17, 1
      %s239 = smul.addr %s238, 8
      %s240 = smul.addr %s239, 8
      %s241 = scalar_lea.vmem %s6, %s240
      %p242 = scmp.lt.s32.totalorder %s17, 1
      %s243 = scalar_select %p242, %s17, 1
      %s244 = smul.addr %s243, 8
      %s245 = smul.addr %s244, 8
      %s246 = scalar_lea.vmem %s0, %s245
      %p247 = scmp.lt.s32.totalorder %s17, 1
      %s248 = scalar_select %p247, %s17, 1
      %s249 = smul.addr %s248, 8
      %s250 = smul.addr %s249, 8
      %s251 = scalar_lea.vmem %s6, %s250
      %v252 = vld [vmem:[%s246] sm:$0xff]
      %v253 = vld [vmem:[%s246 + $0x8] sm:$0xff]
      %v254 = vld [vmem:[%s246 + $0x10] sm:$0xff]
      %v255 = vld [vmem:[%s246 + $0x18] sm:$0xff]
      %v256 = vld [vmem:[%s246 + $0x20] sm:$0xff]
      %v257 = vld [vmem:[%s246 + $0x28] sm:$0xff]
      %v258 = vld [vmem:[%s246 + $0x30] sm:$0xff]
      %v259 = vld [vmem:[%s246 + $0x38] sm:$0xff]
      %v260 = vadd.f32 %v252, %v253
      %261 = vadd.xlane.f32.xlu0 %v260
      %v262 = vpop.xlane.xlu0 %261
      %v263 = vadd.f32 %v254, %v255
      %264 = vadd.xlane.f32.xlu0 %v263
      %v265 = vpop.xlane.xlu0 %264
      %v266 = vadd.f32 %v256, %v257
      %267 = vadd.xlane.f32.xlu0 %v266
      %v268 = vpop.xlane.xlu0 %267
      %v269 = vadd.f32 %v258, %v259
      %270 = vadd.xlane.f32.xlu0 %v269
      %v271 = vpop.xlane.xlu0 %270
      %v272 = vrcp.pop 256.0
      %v273 = vmul.f32 %v262, %v272
      %v274 = vmul.f32 %v265, %v272
      %v275 = vmul.f32 %v268, %v272
      %v276 = vmul.f32 %v271, %v272
      %v277 = vmax.f32 %v252, %v253
      %278 = vmax.xlane.f32.xlu0 %v277
      %v279 = vpop.xlane.xlu0 %278
      %v280 = vmax.f32 %v254, %v255
      %281 = vmax.xlane.f32.xlu0 %v280
      %v282 = vpop.xlane.xlu0 %281
      %v283 = vmax.f32 %v256, %v257
      %284 = vmax.xlane.f32.xlu0 %v283
      %v285 = vpop.xlane.xlu0 %284
      %v286 = vmax.f32 %v258, %v259
      %287 = vmax.xlane.f32.xlu0 %v286
      %v288 = vpop.xlane.xlu0 %287
      %v293 = vlaneseq
      %v294 = vand.u32 %v293, 127
      %v295 = vlaneseq
      %v296 = vshrl.u32 %v295, 7
      %v297 = vsub.s32 %v294, %v296
      %v298 = vrot.slane %v273, %v297
      %v299 = vadd.s32 %v294, 4294967288
      %v300 = vlaneseq
      %v301 = vshrl.u32 %v300, 7
      %v302 = vsub.s32 %v299, %v301
      %v303 = vrot.slane %v274, %v302
      %vm304 = vcmask 130112
      %v305 = vsel %vm304, %v303, %v298
      %v306 = vadd.s32 %v294, 4294967280
      %v307 = vlaneseq
      %v308 = vshrl.u32 %v307, 7
      %v309 = vsub.s32 %v306, %v308
      %v310 = vrot.slane %v275, %v309
      %vm311 = vcmask 195712
      %v312 = vsel %vm311, %v310, %v305
      %v313 = vadd.s32 %v294, 4294967272
      %v314 = vlaneseq
      %v315 = vshrl.u32 %v314, 7
      %v316 = vsub.s32 %v313, %v315
      %v317 = vrot.slane %v276, %v316
      %vm318 = vcmask 261312
      %v319 = vsel %vm318, %v317, %v312
      %v325 = vlaneseq
      %v326 = vshrl.u32 %v325, 7
      %v327 = vsub.s32 %v294, %v326
      %v328 = vrot.slane %v279, %v327
      %v329 = vlaneseq
      %v330 = vshrl.u32 %v329, 7
      %v331 = vsub.s32 %v299, %v330
      %v332 = vrot.slane %v282, %v331
      %v333 = vsel %vm304, %v332, %v328
      %v334 = vlaneseq
      %v335 = vshrl.u32 %v334, 7
      %v336 = vsub.s32 %v306, %v335
      %v337 = vrot.slane %v285, %v336
      %v338 = vsel %vm311, %v337, %v333
      %v339 = vlaneseq
      %v340 = vshrl.u32 %v339, 7
      %v341 = vsub.s32 %v313, %v340
      %v342 = vrot.slane %v288, %v341
      %v343 = vsel %vm318, %v342, %v338
      %vm345 = vcmask 1040384
      %v346 = vsel %vm345, %v319, %v343
      %v347 = vld [vmem:[%s1] sm:$0xff]
      %v348 = vld [vmem:[%s1 + $0x8] sm:$0xff]
      %v349 = vld [vmem:[%s1 + $0x10] sm:$0xff]
      %v350 = vld [vmem:[%s1 + $0x18] sm:$0xff]
      %v351 = vld [vmem:[%s2] sm:$0x1]
      %v353 = vlaneseq
      %v354 = vshrl.u32 %v353, 7
      %v355 = vsub.s32 0, %v354
      %v356 = vrot.slane %v351, %v355
      %vm358 = vcmask 261120
      %v360 = vsel %vm358, %v346, 0
      %362 = vmatprep.subr.mxu0 0.0
      %363 = vmatpush1.msra.mxu0 0.0
      %364 = vmatprep.subr.mxu0 0.0
      %365 = vmatpush1.msra.mxu0 0.0
      %366 = vmatprep.subr.mxu0 0.0
      %367 = vmatpush1.msra.mxu0 0.0
      %368 = vmatprep.subr.mxu0 0.0
      %369 = vmatpush1.msra.mxu0 0.0
      %370 = vmatprep.subr.mxu0 0.0
      %371 = vmatpush1.msra.mxu0 0.0
      %372 = vmatprep.subr.mxu0 0.0
      %373 = vmatpush1.msra.mxu0 0.0
      %374 = vmatprep.subr.mxu0 0.0
      %375 = vmatpush1.msra.mxu0 0.0
      %376 = vmatprep.subr.mxu0 0.0
      %377 = vmatpush1.msra.mxu0 0.0
      %378 = vmatprep.subr.mxu0 0.0
      %379 = vmatpush1.msra.mxu0 0.0
      %380 = vmatprep.subr.mxu0 0.0
      %381 = vmatpush1.msra.mxu0 0.0
      %382 = vmatprep.subr.mxu0 0.0
      %383 = vmatpush1.msra.mxu0 0.0
      %384 = vmatprep.subr.mxu0 0.0
      %385 = vmatpush1.msra.mxu0 0.0
      %386 = vmatprep.subr.mxu0 0.0
      %387 = vmatpush1.msra.mxu0 %v350
      %388 = vmatprep.subr.mxu0 0.0
      %389 = vmatpush1.msra.mxu0 %v349
      %390 = vmatprep.subr.mxu0 0.0
      %391 = vmatpush1.msra.mxu0 %v348
      %392 = vmatprep.subr.mxu0 0.0
      %393 = vmatpush1.msra.mxu0 %v347
      %394 = vmatprep.subr.mxu0 0.0
      %395 = vmatpush2.msra.mxu0 0.0
      %396 = vmatprep.subr.mxu0 0.0
      %397 = vmatpush2.msra.mxu0 0.0
      %398 = vmatprep.subr.mxu0 0.0
      %399 = vmatpush2.msra.mxu0 0.0
      %400 = vmatprep.subr.mxu0 0.0
      %401 = vmatpush2.msra.mxu0 0.0
      %402 = vmatprep.subr.mxu0 0.0
      %403 = vmatpush2.msra.mxu0 0.0
      %404 = vmatprep.subr.mxu0 0.0
      %405 = vmatpush2.msra.mxu0 0.0
      %406 = vmatprep.subr.mxu0 0.0
      %407 = vmatpush2.msra.mxu0 0.0
      %408 = vmatprep.subr.mxu0 0.0
      %409 = vmatpush2.msra.mxu0 0.0
      %410 = vmatprep.subr.mxu0 0.0
      %411 = vmatpush2.msra.mxu0 0.0
      %412 = vmatprep.subr.mxu0 0.0
      %413 = vmatpush2.msra.mxu0 0.0
      %414 = vmatprep.subr.mxu0 0.0
      %415 = vmatpush2.msra.mxu0 0.0
      %416 = vmatprep.subr.mxu0 0.0
      %417 = vmatpush2.msra.mxu0 0.0
      %418 = vmatprep.subr.mxu0 0.0
      %419 = vmatpush2.msra.mxu0 0.0
      %420 = vmatprep.subr.mxu0 0.0
      %421 = vmatpush2.msra.mxu0 0.0
      %422 = vmatprep.subr.mxu0 0.0
      %423 = vmatpush2.msra.mxu0 0.0
      %424 = vmatprep.subr.mxu0 0.0
      %425 = vmatpush2.msra.mxu0 0.0
      %426 = vmatprep.mubr.f32.mxu0 0.0
      %427 = vmatmul.mubr.f32.gmra.mxu0 %v360
      %v428 = vpop.f32.mrf.mxu0
      %v429 = vadd.f32 %v356, %v428
      %v430 = vpop.f32.mrf.mxu0
      %431 = vdwg.mxu0
      %v432 = vmax.f32 %v429, 0.0
      %v433 = vld [vmem:[%s3] sm:$0x3]
      %v434 = vld [vmem:[%s4] sm:$0x1]
      %v436 = vlaneseq
      %v437 = vshrl.u32 %v436, 7
      %v438 = vsub.s32 0, %v437
      %v439 = vrot.slane %v434, %v438
      %vm441 = vcmask 15360
      %v443 = vsel %vm441, %v432, 0
      %vm445 = vcmask 1041408
      %v447 = vsel %vm445, %v433, 0
      %449 = vmatprep.subr.mxu0 0.0
      %450 = vmatpush1.msra.mxu0 0.0
      %451 = vmatprep.subr.mxu0 0.0
      %452 = vmatpush1.msra.mxu0 0.0
      %453 = vmatprep.subr.mxu0 0.0
      %454 = vmatpush1.msra.mxu0 0.0
      %455 = vmatprep.subr.mxu0 0.0
      %456 = vmatpush1.msra.mxu0 0.0
      %457 = vmatprep.subr.mxu0 0.0
      %458 = vmatpush1.msra.mxu0 0.0
      %459 = vmatprep.subr.mxu0 0.0
      %460 = vmatpush1.msra.mxu0 0.0
      %461 = vmatprep.subr.mxu0 0.0
      %462 = vmatpush1.msra.mxu0 0.0
      %463 = vmatprep.subr.mxu0 0.0
      %464 = vmatpush1.msra.mxu0 0.0
      %465 = vmatprep.subr.mxu0 0.0
      %466 = vmatpush1.msra.mxu0 0.0
      %467 = vmatprep.subr.mxu0 0.0
      %468 = vmatpush1.msra.mxu0 0.0
      %469 = vmatprep.subr.mxu0 0.0
      %470 = vmatpush1.msra.mxu0 0.0
      %471 = vmatprep.subr.mxu0 0.0
      %472 = vmatpush1.msra.mxu0 0.0
      %473 = vmatprep.subr.mxu0 0.0
      %474 = vmatpush1.msra.mxu0 0.0
      %475 = vmatprep.subr.mxu0 0.0
      %476 = vmatpush1.msra.mxu0 0.0
      %477 = vmatprep.subr.mxu0 0.0
      %478 = vmatpush1.msra.mxu0 0.0
      %479 = vmatprep.subr.mxu0 0.0
      %480 = vmatpush1.msra.mxu0 %v447
      %481 = vmatprep.subr.mxu0 0.0
      %482 = vmatpush2.msra.mxu0 0.0
      %483 = vmatprep.subr.mxu0 0.0
      %484 = vmatpush2.msra.mxu0 0.0
      %485 = vmatprep.subr.mxu0 0.0
      %486 = vmatpush2.msra.mxu0 0.0
      %487 = vmatprep.subr.mxu0 0.0
      %488 = vmatpush2.msra.mxu0 0.0
      %489 = vmatprep.subr.mxu0 0.0
      %490 = vmatpush2.msra.mxu0 0.0
      %491 = vmatprep.subr.mxu0 0.0
      %492 = vmatpush2.msra.mxu0 0.0
      %493 = vmatprep.subr.mxu0 0.0
      %494 = vmatpush2.msra.mxu0 0.0
      %495 = vmatprep.subr.mxu0 0.0
      %496 = vmatpush2.msra.mxu0 0.0
      %497 = vmatprep.subr.mxu0 0.0
      %498 = vmatpush2.msra.mxu0 0.0
      %499 = vmatprep.subr.mxu0 0.0
      %500 = vmatpush2.msra.mxu0 0.0
      %501 = vmatprep.subr.mxu0 0.0
      %502 = vmatpush2.msra.mxu0 0.0
      %503 = vmatprep.subr.mxu0 0.0
      %504 = vmatpush2.msra.mxu0 0.0
      %505 = vmatprep.subr.mxu0 0.0
      %506 = vmatpush2.msra.mxu0 0.0
      %507 = vmatprep.subr.mxu0 0.0
      %508 = vmatpush2.msra.mxu0 0.0
      %509 = vmatprep.subr.mxu0 0.0
      %510 = vmatpush2.msra.mxu0 0.0
      %511 = vmatprep.subr.mxu0 0.0
      %512 = vmatpush2.msra.mxu0 0.0
      %513 = vmatprep.mubr.f32.mxu0 0.0
      %514 = vmatmul.mubr.f32.gmra.mxu0 %v443
      %v515 = vpop.f32.mrf.mxu0
      %v516 = vadd.f32 %v439, %v515
      %v517 = vpop.f32.mrf.mxu0
      %518 = vdwg.mxu0
      %v520 = vrot.slane %v516, 1
      %v522 = vadd.f32 %v516, %v520
      %v523 = vxor.u32 %v522, 2147483648
      %v524 = vmul.f32 %v523, 1.442695
      %v525 = vpow.pop %v524
      %v526 = vadd.f32 %v525, 1.0
      %v527 = vrcp.pop %v526
      %v528 = vmul.f32 1.0, %v527
      %v529 = vlaneseq
      %v530 = vshrl.u32 %v529, 7
      %v531 = vsub.s32 0, %v530
      %v532 = vrot.slane %v528, %v531
      %534 = vbcast.lane.b32.xlu0 %v532, 256
      %v535 = vpop.permute.xlu0 %534
      %s537 = sor.u32 256, 8
      %538 = vbcast.lane.b32.xlu0 %v532, %s537
      %v539 = vpop.permute.xlu0 %538
      %s541 = sor.u32 256, 16
      %542 = vbcast.lane.b32.xlu0 %v532, %s541
      %v543 = vpop.permute.xlu0 %542
      %s545 = sor.u32 256, 24
      %546 = vbcast.lane.b32.xlu0 %v532, %s545
      %v547 = vpop.permute.xlu0 %546
      %v548 = vmul.f32 %v252, %v535
      %v549 = vmul.f32 %v253, %v535
      %v550 = vmul.f32 %v254, %v539
      %v551 = vmul.f32 %v255, %v539
      %v552 = vmul.f32 %v256, %v543
      %v553 = vmul.f32 %v257, %v543
      %v554 = vmul.f32 %v258, %v547
      %v555 = vmul.f32 %v259, %v547
      %v556 = vmax.f32 %v548, %v552
      %v557 = vmax.f32 %v550, %v554
      %v558 = vmax.f32 %v556, %v557
      %v559 = vrot.slane %v558, 4
      %v560 = vmax.f32 %v558, %v559
      %v561 = vrot.slane %v560, 2
      %v562 = vmax.f32 %v560, %v561
      %v563 = vrot.slane %v562, 1
      %v564 = vmax.f32 %v562, %v563
      %v565 = vmax.f32 %v549, %v553
      %v566 = vmax.f32 %v551, %v555
      %v567 = vmax.f32 %v565, %v566
      %v568 = vrot.slane %v567, 4
      %v569 = vmax.f32 %v567, %v568
      %v570 = vrot.slane %v569, 2
      %v571 = vmax.f32 %v569, %v570
      %v572 = vrot.slane %v571, 1
      %v573 = vmax.f32 %v571, %v572
      %v574 = vadd.f32 %v548, %v550
      %v575 = vadd.f32 %v574, %v552
      %v576 = vadd.f32 %v575, %v554
      %v577 = vrot.slane %v576, 4
      %v578 = vadd.f32 %v576, %v577
      %v579 = vrot.slane %v578, 2
      %v580 = vadd.f32 %v578, %v579
      %v581 = vrot.slane %v580, 1
      %v582 = vadd.f32 %v580, %v581
      %v583 = vadd.f32 %v549, %v551
      %v584 = vadd.f32 %v583, %v553
      %v585 = vadd.f32 %v584, %v555
      %v586 = vrot.slane %v585, 4
      %v587 = vadd.f32 %v585, %v586
      %v588 = vrot.slane %v587, 2
      %v589 = vadd.f32 %v587, %v588
      %v590 = vrot.slane %v589, 1
      %v591 = vadd.f32 %v589, %v590
      %v592 = vrcp.pop 32.0
      %v593 = vmul.f32 %v582, %v592
      %v594 = vmul.f32 %v591, %v592
      %v595 = vld [vmem:[%s5] sm:$0xff]
      %v596 = vld [vmem:[%s5 + $0x8] sm:$0xff]
      %v597 = vld [vmem:[%s5 + $0x10] sm:$0xff]
      %v598 = vld [vmem:[%s5 + $0x18] sm:$0xff]
      %v599 = vld [vmem:[%s5 + $0x20] sm:$0xff]
      %v600 = vld [vmem:[%s5 + $0x28] sm:$0xff]
      %v601 = vld [vmem:[%s5 + $0x30] sm:$0xff]
      %v602 = vld [vmem:[%s5 + $0x38] sm:$0xff]
      %v603 = vld [vmem:[%s5 + $0x40] sm:$0xff]
      %v604 = vld [vmem:[%s5 + $0x48] sm:$0xff]
      %v605 = vld [vmem:[%s5 + $0x50] sm:$0xff]
      %v606 = vld [vmem:[%s5 + $0x58] sm:$0xff]
      %v607 = vld [vmem:[%s5 + $0x60] sm:$0xff]
      %v608 = vld [vmem:[%s5 + $0x68] sm:$0xff]
      %v609 = vld [vmem:[%s5 + $0x70] sm:$0xff]
      %v610 = vld [vmem:[%s5 + $0x78] sm:$0xff]
      %v611 = vld [vmem:[%s5 + $0x80] sm:$0xff]
      %v612 = vld [vmem:[%s5 + $0x88] sm:$0xff]
      %v613 = vld [vmem:[%s5 + $0x90] sm:$0xff]
      %v614 = vld [vmem:[%s5 + $0x98] sm:$0xff]
      %v615 = vld [vmem:[%s5 + $0xa0] sm:$0xff]
      %v616 = vld [vmem:[%s5 + $0xa8] sm:$0xff]
      %v617 = vld [vmem:[%s5 + $0xb0] sm:$0xff]
      %v618 = vld [vmem:[%s5 + $0xb8] sm:$0xff]
      %v619 = vld [vmem:[%s5 + $0xc0] sm:$0xff]
      %v620 = vld [vmem:[%s5 + $0xc8] sm:$0xff]
      %v621 = vld [vmem:[%s5 + $0xd0] sm:$0xff]
      %v622 = vld [vmem:[%s5 + $0xd8] sm:$0xff]
      %v623 = vld [vmem:[%s5 + $0xe0] sm:$0xff]
      %v624 = vld [vmem:[%s5 + $0xe8] sm:$0xff]
      %v625 = vld [vmem:[%s5 + $0xf0] sm:$0xff]
      %v626 = vld [vmem:[%s5 + $0xf8] sm:$0xff]
      %v627 = vld [vmem:[%s5 + $0x100] sm:$0xff]
      %v628 = vld [vmem:[%s5 + $0x108] sm:$0xff]
      %v629 = vld [vmem:[%s5 + $0x110] sm:$0xff]
      %v630 = vld [vmem:[%s5 + $0x118] sm:$0xff]
      %v631 = vld [vmem:[%s5 + $0x120] sm:$0xff]
      %v632 = vld [vmem:[%s5 + $0x128] sm:$0xff]
      %v633 = vld [vmem:[%s5 + $0x130] sm:$0xff]
      %v634 = vld [vmem:[%s5 + $0x138] sm:$0xff]
      %v635 = vld [vmem:[%s5 + $0x140] sm:$0xff]
      %v636 = vld [vmem:[%s5 + $0x148] sm:$0xff]
      %v637 = vld [vmem:[%s5 + $0x150] sm:$0xff]
      %v638 = vld [vmem:[%s5 + $0x158] sm:$0xff]
      %v639 = vld [vmem:[%s5 + $0x160] sm:$0xff]
      %v640 = vld [vmem:[%s5 + $0x168] sm:$0xff]
      %v641 = vld [vmem:[%s5 + $0x170] sm:$0xff]
      %v642 = vld [vmem:[%s5 + $0x178] sm:$0xff]
      %v643 = vld [vmem:[%s5 + $0x180] sm:$0xff]
      %v644 = vld [vmem:[%s5 + $0x188] sm:$0xff]
      %v645 = vld [vmem:[%s5 + $0x190] sm:$0xff]
      %v646 = vld [vmem:[%s5 + $0x198] sm:$0xff]
      %v647 = vld [vmem:[%s5 + $0x1a0] sm:$0xff]
      %v648 = vld [vmem:[%s5 + $0x1a8] sm:$0xff]
      %v649 = vld [vmem:[%s5 + $0x1b0] sm:$0xff]
      %v650 = vld [vmem:[%s5 + $0x1b8] sm:$0xff]
      %v651 = vld [vmem:[%s5 + $0x1c0] sm:$0xff]
      %v652 = vld [vmem:[%s5 + $0x1c8] sm:$0xff]
      %v653 = vld [vmem:[%s5 + $0x1d0] sm:$0xff]
      %v654 = vld [vmem:[%s5 + $0x1d8] sm:$0xff]
      %v655 = vld [vmem:[%s5 + $0x1e0] sm:$0xff]
      %v656 = vld [vmem:[%s5 + $0x1e8] sm:$0xff]
      %v657 = vld [vmem:[%s5 + $0x1f0] sm:$0xff]
      %v658 = vld [vmem:[%s5 + $0x1f8] sm:$0xff]
      %s659 = scalar_lea.vmem %s5, 512
      %v660 = vld [vmem:[%s659] sm:$0xff]
      %v661 = vld [vmem:[%s659 + $0x8] sm:$0xff]
      %v662 = vld [vmem:[%s659 + $0x10] sm:$0xff]
      %v663 = vld [vmem:[%s659 + $0x18] sm:$0xff]
      %v664 = vld [vmem:[%s659 + $0x20] sm:$0xff]
      %v665 = vld [vmem:[%s659 + $0x28] sm:$0xff]
      %v666 = vld [vmem:[%s659 + $0x30] sm:$0xff]
      %v667 = vld [vmem:[%s659 + $0x38] sm:$0xff]
      %v668 = vld [vmem:[%s659 + $0x40] sm:$0xff]
      %v669 = vld [vmem:[%s659 + $0x48] sm:$0xff]
      %v670 = vld [vmem:[%s659 + $0x50] sm:$0xff]
      %v671 = vld [vmem:[%s659 + $0x58] sm:$0xff]
      %v672 = vld [vmem:[%s659 + $0x60] sm:$0xff]
      %v673 = vld [vmem:[%s659 + $0x68] sm:$0xff]
      %v674 = vld [vmem:[%s659 + $0x70] sm:$0xff]
      %v675 = vld [vmem:[%s659 + $0x78] sm:$0xff]
      %v676 = vld [vmem:[%s659 + $0x80] sm:$0xff]
      %v677 = vld [vmem:[%s659 + $0x88] sm:$0xff]
      %v678 = vld [vmem:[%s659 + $0x90] sm:$0xff]
      %v679 = vld [vmem:[%s659 + $0x98] sm:$0xff]
      %v680 = vld [vmem:[%s659 + $0xa0] sm:$0xff]
      %v681 = vld [vmem:[%s659 + $0xa8] sm:$0xff]
      %v682 = vld [vmem:[%s659 + $0xb0] sm:$0xff]
      %v683 = vld [vmem:[%s659 + $0xb8] sm:$0xff]
      %v684 = vld [vmem:[%s659 + $0xc0] sm:$0xff]
      %v685 = vld [vmem:[%s659 + $0xc8] sm:$0xff]
      %v686 = vld [vmem:[%s659 + $0xd0] sm:$0xff]
      %v687 = vld [vmem:[%s659 + $0xd8] sm:$0xff]
      %v688 = vld [vmem:[%s659 + $0xe0] sm:$0xff]
      %v689 = vld [vmem:[%s659 + $0xe8] sm:$0xff]
      %v690 = vld [vmem:[%s659 + $0xf0] sm:$0xff]
      %v691 = vld [vmem:[%s659 + $0xf8] sm:$0xff]
      %v692 = vld [vmem:[%s659 + $0x100] sm:$0xff]
      %v693 = vld [vmem:[%s659 + $0x108] sm:$0xff]
      %v694 = vld [vmem:[%s659 + $0x110] sm:$0xff]
      %v695 = vld [vmem:[%s659 + $0x118] sm:$0xff]
      %v696 = vld [vmem:[%s659 + $0x120] sm:$0xff]
      %v697 = vld [vmem:[%s659 + $0x128] sm:$0xff]
      %v698 = vld [vmem:[%s659 + $0x130] sm:$0xff]
      %v699 = vld [vmem:[%s659 + $0x138] sm:$0xff]
      %v700 = vld [vmem:[%s659 + $0x140] sm:$0xff]
      %v701 = vld [vmem:[%s659 + $0x148] sm:$0xff]
      %v702 = vld [vmem:[%s659 + $0x150] sm:$0xff]
      %v703 = vld [vmem:[%s659 + $0x158] sm:$0xff]
      %v704 = vld [vmem:[%s659 + $0x160] sm:$0xff]
      %v705 = vld [vmem:[%s659 + $0x168] sm:$0xff]
      %v706 = vld [vmem:[%s659 + $0x170] sm:$0xff]
      %v707 = vld [vmem:[%s659 + $0x178] sm:$0xff]
      %v708 = vld [vmem:[%s659 + $0x180] sm:$0xff]
      %v709 = vld [vmem:[%s659 + $0x188] sm:$0xff]
      %v710 = vld [vmem:[%s659 + $0x190] sm:$0xff]
      %v711 = vld [vmem:[%s659 + $0x198] sm:$0xff]
      %v712 = vld [vmem:[%s659 + $0x1a0] sm:$0xff]
      %v713 = vld [vmem:[%s659 + $0x1a8] sm:$0xff]
      %v714 = vld [vmem:[%s659 + $0x1b0] sm:$0xff]
      %v715 = vld [vmem:[%s659 + $0x1b8] sm:$0xff]
      %v716 = vld [vmem:[%s659 + $0x1c0] sm:$0xff]
      %v717 = vld [vmem:[%s659 + $0x1c8] sm:$0xff]
      %v718 = vld [vmem:[%s659 + $0x1d0] sm:$0xff]
      %v719 = vld [vmem:[%s659 + $0x1d8] sm:$0xff]
      %v720 = vld [vmem:[%s659 + $0x1e0] sm:$0xff]
      %v721 = vld [vmem:[%s659 + $0x1e8] sm:$0xff]
      %v722 = vld [vmem:[%s659 + $0x1f0] sm:$0xff]
      %v723 = vld [vmem:[%s659 + $0x1f8] sm:$0xff]
      %724 = vmatprep.subr.mxu0 %v691
      %725 = vmatpush1.msra.mxu0 %v690
      %726 = vmatprep.subr.mxu0 %v689
      %727 = vmatpush1.msra.mxu0 %v688
      %728 = vmatprep.subr.mxu0 %v687
      %729 = vmatpush1.msra.mxu0 %v686
      %730 = vmatprep.subr.mxu0 %v685
      %731 = vmatpush1.msra.mxu0 %v684
      %732 = vmatprep.subr.mxu0 %v683
      %733 = vmatpush1.msra.mxu0 %v682
      %734 = vmatprep.subr.mxu0 %v681
      %735 = vmatpush1.msra.mxu0 %v680
      %736 = vmatprep.subr.mxu0 %v679
      %737 = vmatpush1.msra.mxu0 %v678
      %738 = vmatprep.subr.mxu0 %v677
      %739 = vmatpush1.msra.mxu0 %v676
      %740 = vmatprep.subr.mxu0 %v675
      %741 = vmatpush1.msra.mxu0 %v674
      %742 = vmatprep.subr.mxu0 %v673
      %743 = vmatpush1.msra.mxu0 %v672
      %744 = vmatprep.subr.mxu0 %v671
      %745 = vmatpush1.msra.mxu0 %v670
      %746 = vmatprep.subr.mxu0 %v669
      %747 = vmatpush1.msra.mxu0 %v668
      %748 = vmatprep.subr.mxu0 %v667
      %749 = vmatpush1.msra.mxu0 %v666
      %750 = vmatprep.subr.mxu0 %v665
      %751 = vmatpush1.msra.mxu0 %v664
      %752 = vmatprep.subr.mxu0 %v663
      %753 = vmatpush1.msra.mxu0 %v662
      %754 = vmatprep.subr.mxu0 %v661
      %755 = vmatpush1.msra.mxu0 %v660
      %756 = vmatprep.subr.mxu0 %v723
      %757 = vmatpush2.msra.mxu0 %v722
      %758 = vmatprep.subr.mxu0 %v721
      %759 = vmatpush2.msra.mxu0 %v720
      %760 = vmatprep.subr.mxu0 %v719
      %761 = vmatpush2.msra.mxu0 %v718
      %762 = vmatprep.subr.mxu0 %v717
      %763 = vmatpush2.msra.mxu0 %v716
      %764 = vmatprep.subr.mxu0 %v715
      %765 = vmatpush2.msra.mxu0 %v714
      %766 = vmatprep.subr.mxu0 %v713
      %767 = vmatpush2.msra.mxu0 %v712
      %768 = vmatprep.subr.mxu0 %v711
      %769 = vmatpush2.msra.mxu0 %v710
      %770 = vmatprep.subr.mxu0 %v709
      %771 = vmatpush2.msra.mxu0 %v708
      %772 = vmatprep.subr.mxu0 %v707
      %773 = vmatpush2.msra.mxu0 %v706
      %774 = vmatprep.subr.mxu0 %v705
      %775 = vmatpush2.msra.mxu0 %v704
      %776 = vmatprep.subr.mxu0 %v703
      %777 = vmatpush2.msra.mxu0 %v702
      %778 = vmatprep.subr.mxu0 %v701
      %779 = vmatpush2.msra.mxu0 %v700
      %780 = vmatprep.subr.mxu0 %v699
      %781 = vmatpush2.msra.mxu0 %v698
      %782 = vmatprep.subr.mxu0 %v697
      %783 = vmatpush2.msra.mxu0 %v696
      %784 = vmatprep.subr.mxu0 %v695
      %785 = vmatpush2.msra.mxu0 %v694
      %786 = vmatprep.subr.mxu0 %v693
      %787 = vmatpush2.msra.mxu0 %v692
      %788 = vmatprep.mubr.f32.mxu0 %v594
      %789 = vmatmul.mubr.f32.gmra.mxu0 %v593
      %v790 = vpop.f32.mrf.mxu0
      %v791 = vadd.f32 0.0, %v790
      %v792 = vpop.f32.mrf.mxu0
      %v793 = vadd.f32 0.0, %v792
      %794 = vdwg.mxu0
      %795 = vmatprep.subr.mxu0 %v626
      %796 = vmatpush1.msra.mxu0 %v625
      %797 = vmatprep.subr.mxu0 %v624
      %798 = vmatpush1.msra.mxu0 %v623
      %799 = vmatprep.subr.mxu0 %v622
      %800 = vmatpush1.msra.mxu0 %v621
      %801 = vmatprep.subr.mxu0 %v620
      %802 = vmatpush1.msra.mxu0 %v619
      %803 = vmatprep.subr.mxu0 %v618
      %804 = vmatpush1.msra.mxu0 %v617
      %805 = vmatprep.subr.mxu0 %v616
      %806 = vmatpush1.msra.mxu0 %v615
      %807 = vmatprep.subr.mxu0 %v614
      %808 = vmatpush1.msra.mxu0 %v613
      %809 = vmatprep.subr.mxu0 %v612
      %810 = vmatpush1.msra.mxu0 %v611
      %811 = vmatprep.subr.mxu0 %v610
      %812 = vmatpush1.msra.mxu0 %v609
      %813 = vmatprep.subr.mxu0 %v608
      %814 = vmatpush1.msra.mxu0 %v607
      %815 = vmatprep.subr.mxu0 %v606
      %816 = vmatpush1.msra.mxu0 %v605
      %817 = vmatprep.subr.mxu0 %v604
      %818 = vmatpush1.msra.mxu0 %v603
      %819 = vmatprep.subr.mxu0 %v602
      %820 = vmatpush1.msra.mxu0 %v601
      %821 = vmatprep.subr.mxu0 %v600
      %822 = vmatpush1.msra.mxu0 %v599
      %823 = vmatprep.subr.mxu0 %v598
      %824 = vmatpush1.msra.mxu0 %v597
      %825 = vmatprep.subr.mxu0 %v596
      %826 = vmatpush1.msra.mxu0 %v595
      %827 = vmatprep.subr.mxu0 %v658
      %828 = vmatpush2.msra.mxu0 %v657
      %829 = vmatprep.subr.mxu0 %v656
      %830 = vmatpush2.msra.mxu0 %v655
      %831 = vmatprep.subr.mxu0 %v654
      %832 = vmatpush2.msra.mxu0 %v653
      %833 = vmatprep.subr.mxu0 %v652
      %834 = vmatpush2.msra.mxu0 %v651
      %835 = vmatprep.subr.mxu0 %v650
      %836 = vmatpush2.msra.mxu0 %v649
      %837 = vmatprep.subr.mxu0 %v648
      %838 = vmatpush2.msra.mxu0 %v647
      %839 = vmatprep.subr.mxu0 %v646
      %840 = vmatpush2.msra.mxu0 %v645
      %841 = vmatprep.subr.mxu0 %v644
      %842 = vmatpush2.msra.mxu0 %v643
      %843 = vmatprep.subr.mxu0 %v642
      %844 = vmatpush2.msra.mxu0 %v641
      %845 = vmatprep.subr.mxu0 %v640
      %846 = vmatpush2.msra.mxu0 %v639
      %847 = vmatprep.subr.mxu0 %v638
      %848 = vmatpush2.msra.mxu0 %v637
      %849 = vmatprep.subr.mxu0 %v636
      %850 = vmatpush2.msra.mxu0 %v635
      %851 = vmatprep.subr.mxu0 %v634
      %852 = vmatpush2.msra.mxu0 %v633
      %853 = vmatprep.subr.mxu0 %v632
      %854 = vmatpush2.msra.mxu0 %v631
      %855 = vmatprep.subr.mxu0 %v630
      %856 = vmatpush2.msra.mxu0 %v629
      %857 = vmatprep.subr.mxu0 %v628
      %858 = vmatpush2.msra.mxu0 %v627
      %859 = vmatprep.mubr.f32.mxu0 %v573
      %860 = vmatmul.mubr.f32.gmra.mxu0 %v564
      %v861 = vpop.f32.mrf.mxu0
      %v862 = vadd.f32 %v791, %v861
      %v863 = vpop.f32.mrf.mxu0
      %v864 = vadd.f32 %v793, %v863
      %865 = vdwg.mxu0
      %v866 = vxor.u32 %v862, 2147483648
      %v867 = vxor.u32 %v864, 2147483648
      %v868 = vmul.f32 %v866, 1.442695
      %v869 = vpow.pop %v868
      %v870 = vmul.f32 %v867, 1.442695
      %v871 = vpow.pop %v870
      %v872 = vadd.f32 %v869, 1.0
      %v873 = vadd.f32 %v871, 1.0
      %v874 = vrcp.pop %v872
      %v875 = vmul.f32 1.0, %v874
      %v876 = vrcp.pop %v873
      %v877 = vmul.f32 1.0, %v876
      %v878 = vlaneseq
      %v879 = vshrl.u32 %v878, 7
      %v880 = vsub.s32 0, %v879
      %v881 = vrot.slane %v875, %v880
      %v882 = vlaneseq
      %v883 = vshrl.u32 %v882, 7
      %v884 = vsub.s32 0, %v883
      %v885 = vrot.slane %v877, %v884
      %v886 = vmul.f32 %v548, %v881
      %v887 = vmul.f32 %v549, %v885
      %v888 = vmul.f32 %v550, %v881
      %v889 = vmul.f32 %v551, %v885
      %v890 = vmul.f32 %v552, %v881
      %v891 = vmul.f32 %v553, %v885
      %v892 = vmul.f32 %v554, %v881
      %v893 = vmul.f32 %v555, %v885
      %894 = vst [vmem:[%s251] sm:$0xff] %v886
      %895 = vst [vmem:[%s251 + $0x8] sm:$0xff] %v887
      %896 = vst [vmem:[%s251 + $0x10] sm:$0xff] %v888
      %897 = vst [vmem:[%s251 + $0x18] sm:$0xff] %v889
      %898 = vst [vmem:[%s251 + $0x20] sm:$0xff] %v890
      %899 = vst [vmem:[%s251 + $0x28] sm:$0xff] %v891
      %900 = vst [vmem:[%s251 + $0x30] sm:$0xff] %v892
      %901 = vst [vmem:[%s251 + $0x38] sm:$0xff] %v893
      %p902 = scmp.lt.s32.totalorder %s17, 1
      %s903 = scalar_select %p902, %s17, 1
      %s904 = smul.addr %s903, 8
      %s905 = smul.addr %s904, 8
      %s906 = scalar_lea.vmem %s6, %s905
      // Predicated region
      $region45: #{cbam_forward.1} parent=43 // pred_check
        %p907 = pneg %p166
      $region46: #{cbam_forward.1} parent=43 // pred_check_branch
        %909 = sbr.rel (%p907) target = $region48
      $region47: #{cbam_forward.1} parent=43 // pred_region
        _
      $region48: #{cbam_forward.1} parent=43 // pred_fallthru
        _
    $region44: #{cbam_forward.1} parent=5 // pred_fallthru
      _
    %p910 = scmp.le.s32.totalorder 2, %s12
    // Predicated region
    $region49: #{cbam_forward.1} parent=5 // pred_check
      %p911 = pneg %p910
    $region50: #{cbam_forward.1} parent=5 // pred_check_branch
      %913 = sbr.rel (%p911) target = $region52
    $region51: #{cbam_forward.1} parent=5 // pred_region
      %s914 = ssub.s32 %s12, 2
      // Predicated region
      $region53: #{cbam_forward.1} parent=51 // pred_check
        %p915 = pneg %p172
      $region54: #{cbam_forward.1} parent=51 // pred_check_branch
        %917 = sbr.rel (%p915) target = $region56
      $region55: #{cbam_forward.1} parent=51 // pred_region
        %p918 = scmp.lt.s32.totalorder %s18, 1
        %s919 = scalar_select %p918, %s18, 1
        %s920 = smul.addr %s919, 8
        %s921 = smul.addr %s920, 8
        %s922 = scalar_lea.vmem %s6, %s921
      $region56: #{cbam_forward.1} parent=51 // pred_fallthru
        _
    $region52: #{cbam_forward.1} parent=5 // pred_fallthru
      _
  $region6: #{cbam_forward.1} parent=0 // loop_footer
    %s16 = sadd.s32 1, %s12
  $region7: #{cbam_forward.1} parent=0 // loop_footer_branch
    %11 = sbr.rel target = $region3
  $region8: #{cbam_forward.1} parent=0 // loop_exit
    _

</llo_original>
